<compile_context>
chip_gen: v6e
topology: v6e:2x2x1
jax: 0.10.0
libtpu: 0.0.40
codegen_flags: <defaults>
</compile_context>

<pallas_src>
import functools

import numpy as np
import jax
import jax.numpy as jnp
from jax import lax
from jax.experimental import pallas as pl
from jax.experimental.pallas import tpu as pltpu


def _round_up(x, m):
    return (x + m - 1) // m * m


def _vmem_limit_bytes():
    """Generation-aware scoped-VMEM limit (~65% of physical capacity)."""
    cap = 64 * 1024 * 1024  # conservative fallback (v7x physical VMEM per TC)
    try:
        info = pltpu.get_tpu_info()
        cap = int(getattr(info, "vmem_capacity_bytes", cap))
    except Exception:
        pass
    return max(16 * 1024 * 1024, int(cap * 0.65))


# ---------------------------------------------------------------------------
# Kernels
# ---------------------------------------------------------------------------
def _fused_kernel(p_ref, w_ref, gamma_ref, beta_ref, o_ref, *, true_m, eps, slope):
    # Whole problem VMEM-resident: matmul -> global stats -> BN -> LeakyReLU.
    # Zero-padded rows contribute 0 to sum / sum-of-squares; divide by true M.
    acc = jnp.dot(p_ref[...], w_ref[...], preferred_element_type=jnp.float32)
    inv_m = 1.0 / true_m
    mean = jnp.sum(acc, axis=0, keepdims=True) * inv_m          # (1, Coutp)
    ex2 = jnp.sum(acc * acc, axis=0, keepdims=True) * inv_m     # (1, Coutp)
    var = jnp.maximum(ex2 - mean * mean, 0.0)
    scale = gamma_ref[...] * lax.rsqrt(var + eps)
    shift = beta_ref[...] - mean * scale
    y = acc * scale + shift
    o_ref[...] = jnp.where(y >= 0.0, y, slope * y).astype(o_ref.dtype)


def _conv_stats_kernel(p_ref, w_ref, conv_ref, stats_ref):
    # p_ref: (tm, Kp) mxu dtype; w_ref: (Kp, Coutp) mxu dtype
    # conv_ref: (tm, Coutp) conv intermediate (bf16 on the bf16 path)
    # stats_ref: (2, Coutp) per-tile per-channel [sum, sum_of_squares] (f32)
    acc = jnp.dot(p_ref[...], w_ref[...], preferred_element_type=jnp.float32)
    conv_ref[...] = acc.astype(conv_ref.dtype)
    stats_ref[0:1, :] = jnp.sum(acc, axis=0, keepdims=True)     # from f32 acc
    stats_ref[1:2, :] = jnp.sum(acc * acc, axis=0, keepdims=True)


def _bn_leaky_kernel(conv_ref, scale_ref, shift_ref, o_ref, *, slope):
    # conv_ref: (tm, Coutp); scale/shift: (1, Coutp) f32 (precomputed in wrapper)
    y = conv_ref[...].astype(jnp.float32) * scale_ref[...] + shift_ref[...]
    o_ref[...] = jnp.where(y >= 0.0, y, slope * y).astype(o_ref.dtype)


# ---------------------------------------------------------------------------
# Wrapper
# ---------------------------------------------------------------------------
@functools.partial(
    jax.jit,
    static_argnames=("padding", "eps", "negative_slope", "mxu_dtype",
                     "block_rows", "fuse"))
def cnn_block(x_nchw, weight_oihw, gamma, beta, *, padding=1, eps=1e-5,
              negative_slope=0.1, mxu_dtype=jnp.bfloat16, block_rows=None,
              fuse=None):
    """Forward of CNNBlock. x_nchw: (N, Cin, H, W). Returns (N, Cout, Ho, Wo)."""
    N, Cin, H, W = x_nchw.shape
    Cout, _, KH, KW = weight_oihw.shape
    Ho = H + 2 * padding - KH + 1          # stride = 1
    Wo = W + 2 * padding - KW + 1

    M = N * Ho * Wo
    K = KH * KW * Cin
    Kp = _round_up(K, 128)                 # lane/contraction dim
    Coutp = _round_up(Cout, 128)           # lane-dense output channels

    out_dtype = x_nchw.dtype
    mxu_bytes = np.dtype(mxu_dtype).itemsize
    out_bytes = np.dtype(out_dtype).itemsize
    is_bf16 = np.dtype(mxu_dtype) == np.dtype(jnp.bfloat16)
    conv_dtype = jnp.bfloat16 if is_bf16 else jnp.float32
    conv_bytes = np.dtype(conv_dtype).itemsize

    vmem_limit = _vmem_limit_bytes()

    # ---- layout plumbing (plain JAX, in MXU dtype): NHWC, spatial pad, im2col ----
    # TODO(synk): for production layer shapes, replace the materialized im2col slab
    # with an in-kernel (kh,kw) reduction over shifted NHWC windows (avoids ~9x HBM blow-up).
    x_nhwc = jnp.transpose(x_nchw, (0, 2, 3, 1)).astype(mxu_dtype)
    xp = jnp.pad(x_nhwc, ((0, 0), (padding, padding), (padding, padding), (0, 0)))
    cols = [xp[:, kh:kh + Ho, kw:kw + Wo, :]
            for kh in range(KH) for kw in range(KW)]
    patches = jnp.concatenate(cols, axis=-1).reshape(M, K)

    w2d = jnp.transpose(weight_oihw, (2, 3, 1, 0)).reshape(K, Cout).astype(mxu_dtype)
    w2d = jnp.pad(w2d, ((0, Kp - K), (0, Coutp - Cout)))

    gamma2 = jnp.pad(gamma.astype(jnp.float32), (0, Coutp - Cout)).reshape(1, Coutp)
    beta2 = jnp.pad(beta.astype(jnp.float32), (0, Coutp - Cout)).reshape(1, Coutp)

    # ---- fused single-call path when everything fits comfortably in VMEM ----
    M8 = _round_up(M, 8)
    fused_bytes = (M8 * Kp * mxu_bytes + Kp * Coutp * mxu_bytes
                   + 3 * M8 * Coutp * 4 + M8 * Coutp * out_bytes + 2 * Coutp * 4)
    if fuse is None:
        fuse = 2 * fused_bytes <= vmem_limit

    if fuse:
        patches_p = jnp.pad(patches, ((0, M8 - M), (0, Kp - K)))
        out2d = pl.pallas_call(
            functools.partial(_fused_kernel, true_m=float(M), eps=eps,
                              slope=negative_slope),
            out_shape=jax.ShapeDtypeStruct((M8, Coutp), out_dtype),
            grid=(1,),
            in_specs=[
                pl.BlockSpec((M8, Kp), lambda i: (0, 0)),
                pl.BlockSpec((Kp, Coutp), lambda i: (0, 0)),
                pl.BlockSpec((1, Coutp), lambda i: (0, 0)),
                pl.BlockSpec((1, Coutp), lambda i: (0, 0)),
            ],
            out_specs=pl.BlockSpec((M8, Coutp), lambda i: (0, 0)),
            compiler_params=pltpu.CompilerParams(
                dimension_semantics=("arbitrary",),
                vmem_limit_bytes=vmem_limit),
        )(patches_p, w2d, gamma2, beta2)
        out_nhwc = out2d[:M, :Cout].reshape(N, Ho, Wo, Cout)
        return jnp.transpose(out_nhwc, (0, 3, 1, 2))

    # ---- two-pass tiled path: row-band tile sized from the VMEM budget ----
    budget = int(vmem_limit * 0.75)
    fixed = 2 * Kp * Coutp * mxu_bytes + 8 * Coutp * 4
    per_row = max(2 * (Kp * mxu_bytes + Coutp * conv_bytes),           # pass 1
                  2 * (Coutp * conv_bytes + Coutp * out_bytes))        # pass 2
    tm_budget = max(8, (budget - fixed) // per_row)
    tm_cap = 1024 if block_rows is None else block_rows
    tm = max(8, (min(tm_budget, tm_cap, _round_up(M, 8)) // 8) * 8)
    M_pad = _round_up(M, tm)
    num_tiles = M_pad // tm
    if num_tiles > 1 and num_tiles % 2 == 1:
        # Even tile count keeps v7x's two TensorCores balanced on the
        # "parallel" grid axis (no effect on single-TC v5e/v6e).
        num_tiles += 1
        tm = _round_up(-(-M // num_tiles), 8)
        M_pad = tm * num_tiles

    patches_p = jnp.pad(patches, ((0, M_pad - M), (0, Kp - K)))

    cparams = pltpu.CompilerParams(
        dimension_semantics=("parallel",), vmem_limit_bytes=vmem_limit)

    # Pass 1: conv matmul + per-tile per-channel [sum, sum_of_squares].
    conv_flat, stats = pl.pallas_call(
        _conv_stats_kernel,
        out_shape=(jax.ShapeDtypeStruct((M_pad, Coutp), conv_dtype),
                   jax.ShapeDtypeStruct((num_tiles, 2, Coutp), jnp.float32)),
        grid=(num_tiles,),
        in_specs=[
            pl.BlockSpec((tm, Kp), lambda i: (i, 0)),
            pl.BlockSpec((Kp, Coutp), lambda i: (0, 0)),
        ],
        out_specs=(
            pl.BlockSpec((tm, Coutp), lambda i: (i, 0)),
            pl.BlockSpec((None, 2, Coutp), lambda i: (i, 0, 0)),
        ),
        compiler_params=cparams,
    )(patches_p, w2d)

    # Global BN statistics (training mode: biased variance over N*Ho*Wo).
    # Padded rows are all-zero so they contribute nothing; divide by true M.
    totals = jnp.sum(stats, axis=0)                              # (2, Coutp)
    mean = (totals[0] / M).reshape(1, Coutp)
    var = jnp.maximum(totals[1].reshape(1, Coutp) / M - mean * mean, 0.0)
    scale = gamma2 * lax.rsqrt(var + eps)
    shift = beta2 - mean * scale

    # Pass 2: normalize + affine + LeakyReLU, single lane-dense store.
    # Alias the conv slab onto the output when dtypes match to avoid a second
    # (M_pad, Coutp) HBM allocation.
    alias = {0: 0} if np.dtype(conv_dtype) == np.dtype(out_dtype) else {}
    out2d = pl.pallas_call(
        functools.partial(_bn_leaky_kernel, slope=negative_slope),
        out_shape=jax.ShapeDtypeStruct((M_pad, Coutp), out_dtype),
        grid=(num_tiles,),
        in_specs=[
            pl.BlockSpec((tm, Coutp), lambda i: (i, 0)),
            pl.BlockSpec((1, Coutp), lambda i: (0, 0)),
            pl.BlockSpec((1, Coutp), lambda i: (0, 0)),
        ],
        out_specs=pl.BlockSpec((tm, Coutp), lambda i: (i, 0)),
        compiler_params=cparams,
        input_output_aliases=alias,
    )(conv_flat, scale, shift)

    out_nhwc = out2d[:M, :Cout].reshape(N, Ho, Wo, Cout)
    return jnp.transpose(out_nhwc, (0, 3, 1, 2))
    # TODO(synk): BatchNorm running_mean/running_var updates are a training-time
    # side effect that does not affect the forward output; not materialized here.


def _reference(x_nchw, weight_oihw, gamma, beta, *, padding=1, eps=1e-5):
    """Pure-JAX f32 reference mirroring PyTorch semantics (training-mode BN)."""
    conv = lax.conv_general_dilated(
        x_nchw.astype(jnp.float32), weight_oihw.astype(jnp.float32),
        window_strides=(1, 1),
        padding=((padding, padding), (padding, padding)),
        dimension_numbers=("NCHW", "OIHW", "NCHW"))
    mean = jnp.mean(conv, axis=(0, 2, 3), keepdims=True)
    var = jnp.mean((conv - mean) ** 2, axis=(0, 2, 3), keepdims=True)
    xhat = (conv - mean) * lax.rsqrt(var + eps)
    y = xhat * gamma.reshape(1, -1, 1, 1) + beta.reshape(1, -1, 1, 1)
    return jnp.where(y >= 0, y, 0.1 * y)


if __name__ == "__main__":
    key = jax.random.PRNGKey(0)
    k_x, k_w = jax.random.split(key)

    N, Cin, H, W = 2, 4, 16, 16
    Cout, KH, KW = 8, 3, 3

    x = jax.random.normal(k_x, (N, Cin, H, W), dtype=jnp.float32)
    # Deterministic conv weight init (kaiming-uniform-like scale).
    fan_in = Cin * KH * KW
    bound = (1.0 / fan_in) ** 0.5
    w = jax.random.uniform(k_w, (Cout, Cin, KH, KW), jnp.float32, -bound, bound)
    # BatchNorm2d default init: weight=1, bias=0.
    gamma = jnp.ones((Cout,), jnp.float32)
    beta = jnp.zeros((Cout,), jnp.float32)

    ref = _reference(x, w, gamma, beta)

    # Fused single-call path (auto-selected: the whole problem is VMEM-resident).
    out_f32 = jax.block_until_ready(
        cnn_block(x, w, gamma, beta, mxu_dtype=jnp.float32))
    assert out_f32.shape == (N, Cout, H, W), out_f32.shape
    assert jnp.allclose(out_f32, ref, atol=1e-4, rtol=1e-4), (
        float(jnp.max(jnp.abs(out_f32 - ref))))

    out_bf16 = jax.block_until_ready(cnn_block(x, w, gamma, beta))
    assert out_bf16.shape == (N, Cout, H, W), out_bf16.shape
    assert jnp.allclose(out_bf16, ref, atol=5e-2, rtol=5e-2), (
        float(jnp.max(jnp.abs(out_bf16 - ref))))

    # Two-pass tiled path (forced): exercises per-tile stats reduction, the
    # scale/shift precompute, the conv-slab alias (f32) and the bf16 conv slab.
    out_2p_f32 = jax.block_until_ready(
        cnn_block(x, w, gamma, beta, mxu_dtype=jnp.float32,
                  fuse=False, block_rows=128))
    assert jnp.allclose(out_2p_f32, ref, atol=1e-4, rtol=1e-4), (
        float(jnp.max(jnp.abs(out_2p_f32 - ref))))

    out_2p_bf16 = jax.block_until_ready(
        cnn_block(x, w, gamma, beta, fuse=False, block_rows=128))
    assert jnp.allclose(out_2p_bf16, ref, atol=5e-2, rtol=5e-2), (
        float(jnp.max(jnp.abs(out_2p_bf16 - ref))))

    print("KERNEL_OK")
</pallas_src>

<mosaic_0001>
module attributes {stable_mosaic.version = 11 : i64} {
  func.func @_fused_kernel(%arg0: i32, %arg1: memref<512x128xf32, #tpu.memory_space<vmem>>, %arg2: memref<128x128xf32, #tpu.memory_space<vmem>>, %arg3: memref<1x128xf32, #tpu.memory_space<vmem>>, %arg4: memref<1x128xf32, #tpu.memory_space<vmem>>, %arg5: memref<512x128xf32, #tpu.memory_space<vmem>>) attributes {dimension_semantics = [#tpu.dimension_semantics<arbitrary>], iteration_bounds = array<i64: 1>, scalar_prefetch = 0 : i64, scratch_operands = 0 : i64, tpu.core_type = #tpu.core_type<tc>, window_params = [{pipeline_mode = #tpu.pipeline_mode<synchronous>, transform_indices = @transform_0, window_bounds = array<i64: 512, 128>}, {pipeline_mode = #tpu.pipeline_mode<synchronous>, transform_indices = @transform_1, window_bounds = array<i64: 128, 128>}, {pipeline_mode = #tpu.pipeline_mode<synchronous>, transform_indices = @transform_2, window_bounds = array<i64: 1, 128>}, {pipeline_mode = #tpu.pipeline_mode<synchronous>, transform_indices = @transform_3, window_bounds = array<i64: 1, 128>}, {pipeline_mode = #tpu.pipeline_mode<synchronous>, transform_indices = @transform_4, window_bounds = array<i64: 512, 128>}]} {
    %c0 = arith.constant 0 : index
    %c0_0 = arith.constant 0 : index
    %0 = vector.load %arg1[%c0, %c0_0] : memref<512x128xf32, #tpu.memory_space<vmem>>, vector<512x128xf32>
    %c0_1 = arith.constant 0 : index
    %c0_2 = arith.constant 0 : index
    %1 = vector.load %arg2[%c0_1, %c0_2] : memref<128x128xf32, #tpu.memory_space<vmem>>, vector<128x128xf32>
    %cst = arith.constant dense<0.000000e+00> : vector<512x128xf32>
    %2 = tpu.matmul %0, %1, %cst {dimension_numbers = #tpu.dot_dimension_numbers<[1], [0], [0], [1], [0, 0, 1, 1], [], []>} : vector<512x128xf32>, vector<128x128xf32>, vector<512x128xf32> -> vector<512x128xf32>
    %cst_3 = arith.constant dense<0.000000e+00> : vector<128xf32>
    %3 = vector.multi_reduction <add>, %2, %cst_3 [0] : vector<512x128xf32> to vector<128xf32>
    %4 = vector.shape_cast %3 : vector<128xf32> to vector<1x128xf32>
    %cst_4 = arith.constant 0.001953125 : f32
    %5 = vector.broadcast %cst_4 : f32 to vector<1x128xf32>
    %6 = arith.mulf %4, %5 : vector<1x128xf32>
    %7 = arith.mulf %2, %2 : vector<512x128xf32>
    %cst_5 = arith.constant dense<0.000000e+00> : vector<128xf32>
    %8 = vector.multi_reduction <add>, %7, %cst_5 [0] : vector<512x128xf32> to vector<128xf32>
    %9 = vector.shape_cast %8 : vector<128xf32> to vector<1x128xf32>
    %cst_6 = arith.constant 0.001953125 : f32
    %10 = vector.broadcast %cst_6 : f32 to vector<1x128xf32>
    %11 = arith.mulf %9, %10 : vector<1x128xf32>
    %12 = arith.mulf %6, %6 : vector<1x128xf32>
    %13 = arith.subf %11, %12 : vector<1x128xf32>
    %cst_7 = arith.constant 0.000000e+00 : f32
    %14 = vector.broadcast %cst_7 : f32 to vector<1x128xf32>
    %15 = arith.maximumf %13, %14 : vector<1x128xf32>
    %c0_8 = arith.constant 0 : index
    %c0_9 = arith.constant 0 : index
    %16 = vector.load %arg3[%c0_8, %c0_9] : memref<1x128xf32, #tpu.memory_space<vmem>>, vector<1x128xf32>
    %cst_10 = arith.constant 9.99999974E-6 : f32
    %17 = vector.broadcast %cst_10 : f32 to vector<1x128xf32>
    %18 = arith.addf %15, %17 : vector<1x128xf32>
    %19 = math.rsqrt %18 : vector<1x128xf32>
    %20 = arith.mulf %16, %19 : vector<1x128xf32>
    %c0_11 = arith.constant 0 : index
    %c0_12 = arith.constant 0 : index
    %21 = vector.load %arg4[%c0_11, %c0_12] : memref<1x128xf32, #tpu.memory_space<vmem>>, vector<1x128xf32>
    %22 = arith.mulf %6, %20 : vector<1x128xf32>
    %23 = arith.subf %21, %22 : vector<1x128xf32>
    %24 = vector.broadcast %20 : vector<1x128xf32> to vector<512x128xf32>
    %25 = arith.mulf %2, %24 : vector<512x128xf32>
    %26 = vector.broadcast %23 : vector<1x128xf32> to vector<512x128xf32>
    %27 = arith.addf %25, %26 : vector<512x128xf32>
    %cst_13 = arith.constant 0.000000e+00 : f32
    %28 = vector.broadcast %cst_13 : f32 to vector<512x128xf32>
    %29 = arith.cmpf oge, %27, %28 : vector<512x128xf32>
    %cst_14 = arith.constant 1.000000e-01 : f32
    %30 = vector.broadcast %cst_14 : f32 to vector<512x128xf32>
    %31 = arith.mulf %30, %27 : vector<512x128xf32>
    %32 = arith.select %29, %27, %31 : vector<512x128xi1>, vector<512x128xf32>
    %c0_15 = arith.constant 0 : index
    %c0_16 = arith.constant 0 : index
    %33 = vector.load %arg5[%c0_15, %c0_16] : memref<512x128xf32, #tpu.memory_space<vmem>>, vector<512x128xf32>
    tpu.vector_store %arg5[%c0_15, %c0_16], %32 {strides = array<i32>} : memref<512x128xf32, #tpu.memory_space<vmem>>, vector<512x128xf32>,
    return
  }
  func.func @transform_0(%arg0: i32) -> (i32, i32) {
    %c0_i32 = arith.constant 0 : i32
    %c0_i32_0 = arith.constant 0 : i32
    %c0_i32_1 = arith.constant 0 : i32
    return %c0_i32, %c0_i32_0 : i32, i32
  }
  func.func @transform_1(%arg0: i32) -> (i32, i32) {
    %c0_i32 = arith.constant 0 : i32
    %c0_i32_0 = arith.constant 0 : i32
    %c0_i32_1 = arith.constant 0 : i32
    return %c0_i32, %c0_i32_0 : i32, i32
  }
  func.func @transform_2(%arg0: i32) -> (i32, i32) {
    %c0_i32 = arith.constant 0 : i32
    %c0_i32_0 = arith.constant 0 : i32
    %c0_i32_1 = arith.constant 0 : i32
    return %c0_i32, %c0_i32_0 : i32, i32
  }
  func.func @transform_3(%arg0: i32) -> (i32, i32) {
    %c0_i32 = arith.constant 0 : i32
    %c0_i32_0 = arith.constant 0 : i32
    %c0_i32_1 = arith.constant 0 : i32
    return %c0_i32, %c0_i32_0 : i32, i32
  }
  func.func @transform_4(%arg0: i32) -> (i32, i32) {
    %c0_i32 = arith.constant 0 : i32
    %c0_i32_0 = arith.constant 0 : i32
    %c0_i32_1 = arith.constant 0 : i32
    return %c0_i32, %c0_i32_0 : i32, i32
  }
}

</mosaic_0001>

<llo_original>
// kernel: cnn_block.1
$region0: #{cnn_block.1}
  #allocation0 [shape = 'u32[]', space=smem, size = 0x4, offset = 0x4, fixed_abs, tag = 'smem constant byte address 0x4 - core index']
  #allocation1 [shape = 'u32[144,128]{1,0:T(1,128)}', space=vmem, size = 0x12000, scoped, tag = 'internal scratch']
  %s0 = inlined_call_operand.vmem [shape: f32[512,128], index: 0, kind: input, shape index: {}]
  %s1 = inlined_call_operand.vmem [shape: f32[128,128], index: 1, kind: input, shape index: {}]
  %s2 = inlined_call_operand.vmem [shape: f32[1,128], index: 2, kind: input, shape index: {}]
  %s3 = inlined_call_operand.vmem [shape: f32[1,128], index: 3, kind: input, shape index: {}]
  %s4 = inlined_call_operand.vmem [shape: f32[512,128], index: 4, kind: output, shape index: {}]
  %s5 = sld [smem:[#allocation0]]
  $region26: #{cnn_block.1} parent=0
    _
  %s7 = ssub.s32 1, %s5
  %s8 = scalar_select 0, %s7, %s5
  // Predicated region
  $region2: #{cnn_block.1} parent=0 // pred_check
    _
  $region3: #{cnn_block.1} parent=0 // pred_check_branch
    %10 = sbr.rel (0) target = $region5
  $region4: #{cnn_block.1} parent=0 // pred_region
    _
  $region5: #{cnn_block.1} parent=0 // pred_fallthru
    _
  // Predicated region
  $region6: #{cnn_block.1} parent=0 // pred_check
    _
  $region7: #{cnn_block.1} parent=0 // pred_check_branch
    %12 = sbr.rel (0) target = $region9
  $region8: #{cnn_block.1} parent=0 // pred_region
    _
  $region9: #{cnn_block.1} parent=0 // pred_fallthru
    _
  // Predicated region
  $region10: #{cnn_block.1} parent=0 // pred_check
    _
  $region11: #{cnn_block.1} parent=0 // pred_check_branch
    %14 = sbr.rel (0) target = $region13
  $region12: #{cnn_block.1} parent=0 // pred_region
    _
  $region13: #{cnn_block.1} parent=0 // pred_fallthru
    _
  // Predicated region
  $region14: #{cnn_block.1} parent=0 // pred_check
    _
  $region15: #{cnn_block.1} parent=0 // pred_check_branch
    %16 = sbr.rel (0) target = $region17
  $region16: #{cnn_block.1} parent=0 // pred_region
    _
  $region17: #{cnn_block.1} parent=0 // pred_fallthru
    _
  %v17 = vld [vmem:[%s0] sm:$0xff]
  %v18 = vld [vmem:[%s0 + $0x8] sm:$0xff]
  %v19 = vld [vmem:[%s0 + $0x10] sm:$0xff]
  %v20 = vld [vmem:[%s0 + $0x18] sm:$0xff]
  %v21 = vld [vmem:[%s0 + $0x20] sm:$0xff]
  %v22 = vld [vmem:[%s0 + $0x28] sm:$0xff]
  %v23 = vld [vmem:[%s0 + $0x30] sm:$0xff]
  %v24 = vld [vmem:[%s0 + $0x38] sm:$0xff]
  %v25 = vld [vmem:[%s0 + $0x40] sm:$0xff]
  %v26 = vld [vmem:[%s0 + $0x48] sm:$0xff]
  %v27 = vld [vmem:[%s0 + $0x50] sm:$0xff]
  %v28 = vld [vmem:[%s0 + $0x58] sm:$0xff]
  %v29 = vld [vmem:[%s0 + $0x60] sm:$0xff]
  %v30 = vld [vmem:[%s0 + $0x68] sm:$0xff]
  %v31 = vld [vmem:[%s0 + $0x70] sm:$0xff]
  %v32 = vld [vmem:[%s0 + $0x78] sm:$0xff]
  %v33 = vld [vmem:[%s0 + $0x80] sm:$0xff]
  %v34 = vld [vmem:[%s0 + $0x88] sm:$0xff]
  %v35 = vld [vmem:[%s0 + $0x90] sm:$0xff]
  %v36 = vld [vmem:[%s0 + $0x98] sm:$0xff]
  %v37 = vld [vmem:[%s0 + $0xa0] sm:$0xff]
  %v38 = vld [vmem:[%s0 + $0xa8] sm:$0xff]
  %v39 = vld [vmem:[%s0 + $0xb0] sm:$0xff]
  %v40 = vld [vmem:[%s0 + $0xb8] sm:$0xff]
  %v41 = vld [vmem:[%s0 + $0xc0] sm:$0xff]
  %v42 = vld [vmem:[%s0 + $0xc8] sm:$0xff]
  %v43 = vld [vmem:[%s0 + $0xd0] sm:$0xff]
  %v44 = vld [vmem:[%s0 + $0xd8] sm:$0xff]
  %v45 = vld [vmem:[%s0 + $0xe0] sm:$0xff]
  %v46 = vld [vmem:[%s0 + $0xe8] sm:$0xff]
  %v47 = vld [vmem:[%s0 + $0xf0] sm:$0xff]
  %v48 = vld [vmem:[%s0 + $0xf8] sm:$0xff]
  %v49 = vld [vmem:[%s0 + $0x100] sm:$0xff]
  %v50 = vld [vmem:[%s0 + $0x108] sm:$0xff]
  %v51 = vld [vmem:[%s0 + $0x110] sm:$0xff]
  %v52 = vld [vmem:[%s0 + $0x118] sm:$0xff]
  %v53 = vld [vmem:[%s0 + $0x120] sm:$0xff]
  %v54 = vld [vmem:[%s0 + $0x128] sm:$0xff]
  %v55 = vld [vmem:[%s0 + $0x130] sm:$0xff]
  %v56 = vld [vmem:[%s0 + $0x138] sm:$0xff]
  %v57 = vld [vmem:[%s0 + $0x140] sm:$0xff]
  %v58 = vld [vmem:[%s0 + $0x148] sm:$0xff]
  %v59 = vld [vmem:[%s0 + $0x150] sm:$0xff]
  %v60 = vld [vmem:[%s0 + $0x158] sm:$0xff]
  %v61 = vld [vmem:[%s0 + $0x160] sm:$0xff]
  %v62 = vld [vmem:[%s0 + $0x168] sm:$0xff]
  %v63 = vld [vmem:[%s0 + $0x170] sm:$0xff]
  %v64 = vld [vmem:[%s0 + $0x178] sm:$0xff]
  %v65 = vld [vmem:[%s0 + $0x180] sm:$0xff]
  %v66 = vld [vmem:[%s0 + $0x188] sm:$0xff]
  %v67 = vld [vmem:[%s0 + $0x190] sm:$0xff]
  %v68 = vld [vmem:[%s0 + $0x198] sm:$0xff]
  %v69 = vld [vmem:[%s0 + $0x1a0] sm:$0xff]
  %v70 = vld [vmem:[%s0 + $0x1a8] sm:$0xff]
  %v71 = vld [vmem:[%s0 + $0x1b0] sm:$0xff]
  %v72 = vld [vmem:[%s0 + $0x1b8] sm:$0xff]
  %v73 = vld [vmem:[%s0 + $0x1c0] sm:$0xff]
  %v74 = vld [vmem:[%s0 + $0x1c8] sm:$0xff]
  %v75 = vld [vmem:[%s0 + $0x1d0] sm:$0xff]
  %v76 = vld [vmem:[%s0 + $0x1d8] sm:$0xff]
  %v77 = vld [vmem:[%s0 + $0x1e0] sm:$0xff]
  %v78 = vld [vmem:[%s0 + $0x1e8] sm:$0xff]
  %v79 = vld [vmem:[%s0 + $0x1f0] sm:$0xff]
  %v80 = vld [vmem:[%s0 + $0x1f8] sm:$0xff]
  %v81 = vld [vmem:[%s1] sm:$0xff]
  %v82 = vld [vmem:[%s1 + $0x8] sm:$0xff]
  %v83 = vld [vmem:[%s1 + $0x10] sm:$0xff]
  %v84 = vld [vmem:[%s1 + $0x18] sm:$0xff]
  %v85 = vld [vmem:[%s1 + $0x20] sm:$0xff]
  %v86 = vld [vmem:[%s1 + $0x28] sm:$0xff]
  %v87 = vld [vmem:[%s1 + $0x30] sm:$0xff]
  %v88 = vld [vmem:[%s1 + $0x38] sm:$0xff]
  %v89 = vld [vmem:[%s1 + $0x40] sm:$0xff]
  %v90 = vld [vmem:[%s1 + $0x48] sm:$0xff]
  %v91 = vld [vmem:[%s1 + $0x50] sm:$0xff]
  %v92 = vld [vmem:[%s1 + $0x58] sm:$0xff]
  %v93 = vld [vmem:[%s1 + $0x60] sm:$0xff]
  %v94 = vld [vmem:[%s1 + $0x68] sm:$0xff]
  %v95 = vld [vmem:[%s1 + $0x70] sm:$0xff]
  %v96 = vld [vmem:[%s1 + $0x78] sm:$0xff]
  %97 = vmatprep.subr.mxu0 0.0
  %98 = vmatpush1.msra.mxu0 %v96
  %99 = vmatprep.subr.mxu0 0.0
  %100 = vmatpush1.msra.mxu0 %v95
  %101 = vmatprep.subr.mxu0 0.0
  %102 = vmatpush1.msra.mxu0 %v94
  %103 = vmatprep.subr.mxu0 0.0
  %104 = vmatpush1.msra.mxu0 %v93
  %105 = vmatprep.subr.mxu0 0.0
  %106 = vmatpush1.msra.mxu0 %v92
  %107 = vmatprep.subr.mxu0 0.0
  %108 = vmatpush1.msra.mxu0 %v91
  %109 = vmatprep.subr.mxu0 0.0
  %110 = vmatpush1.msra.mxu0 %v90
  %111 = vmatprep.subr.mxu0 0.0
  %112 = vmatpush1.msra.mxu0 %v89
  %113 = vmatprep.subr.mxu0 0.0
  %114 = vmatpush1.msra.mxu0 %v88
  %115 = vmatprep.subr.mxu0 0.0
  %116 = vmatpush1.msra.mxu0 %v87
  %117 = vmatprep.subr.mxu0 0.0
  %118 = vmatpush1.msra.mxu0 %v86
  %119 = vmatprep.subr.mxu0 0.0
  %120 = vmatpush1.msra.mxu0 %v85
  %121 = vmatprep.subr.mxu0 0.0
  %122 = vmatpush1.msra.mxu0 %v84
  %123 = vmatprep.subr.mxu0 0.0
  %124 = vmatpush1.msra.mxu0 %v83
  %125 = vmatprep.subr.mxu0 0.0
  %126 = vmatpush1.msra.mxu0 %v82
  %127 = vmatprep.subr.mxu0 0.0
  %128 = vmatpush1.msra.mxu0 %v81
  %129 = vmatprep.subr.mxu0 0.0
  %130 = vmatpush2.msra.mxu0 0.0
  %131 = vmatprep.subr.mxu0 0.0
  %132 = vmatpush2.msra.mxu0 0.0
  %133 = vmatprep.subr.mxu0 0.0
  %134 = vmatpush2.msra.mxu0 0.0
  %135 = vmatprep.subr.mxu0 0.0
  %136 = vmatpush2.msra.mxu0 0.0
  %137 = vmatprep.subr.mxu0 0.0
  %138 = vmatpush2.msra.mxu0 0.0
  %139 = vmatprep.subr.mxu0 0.0
  %140 = vmatpush2.msra.mxu0 0.0
  %141 = vmatprep.subr.mxu0 0.0
  %142 = vmatpush2.msra.mxu0 0.0
  %143 = vmatprep.subr.mxu0 0.0
  %144 = vmatpush2.msra.mxu0 0.0
  %145 = vmatprep.subr.mxu0 0.0
  %146 = vmatpush2.msra.mxu0 0.0
  %147 = vmatprep.subr.mxu0 0.0
  %148 = vmatpush2.msra.mxu0 0.0
  %149 = vmatprep.subr.mxu0 0.0
  %150 = vmatpush2.msra.mxu0 0.0
  %151 = vmatprep.subr.mxu0 0.0
  %152 = vmatpush2.msra.mxu0 0.0
  %153 = vmatprep.subr.mxu0 0.0
  %154 = vmatpush2.msra.mxu0 0.0
  %155 = vmatprep.subr.mxu0 0.0
  %156 = vmatpush2.msra.mxu0 0.0
  %157 = vmatprep.subr.mxu0 0.0
  %158 = vmatpush2.msra.mxu0 0.0
  %159 = vmatprep.subr.mxu0 0.0
  %160 = vmatpush2.msra.mxu0 0.0
  %161 = vmatprep.mubr.f32.mxu0 0.0
  %162 = vmatmul.mubr.f32.gmra.mxu0 %v17
  %v163 = vpop.f32.mrf.mxu0
  %v164 = vadd.f32 0.0, %v163
  %v165 = vpop.f32.mrf.mxu0
  %166 = vmatprep.mubr.f32.mxu0 0.0
  %167 = vmatmul.mubr.f32.gmra.mxu0 %v18
  %v168 = vpop.f32.mrf.mxu0
  %v169 = vadd.f32 0.0, %v168
  %v170 = vpop.f32.mrf.mxu0
  %171 = vmatprep.mubr.f32.mxu0 0.0
  %172 = vmatmul.mubr.f32.gmra.mxu0 %v19
  %v173 = vpop.f32.mrf.mxu0
  %v174 = vadd.f32 0.0, %v173
  %v175 = vpop.f32.mrf.mxu0
  %176 = vmatprep.mubr.f32.mxu0 0.0
  %177 = vmatmul.mubr.f32.gmra.mxu0 %v20
  %v178 = vpop.f32.mrf.mxu0
  %v179 = vadd.f32 0.0, %v178
  %v180 = vpop.f32.mrf.mxu0
  %181 = vmatprep.mubr.f32.mxu0 0.0
  %182 = vmatmul.mubr.f32.gmra.mxu0 %v21
  %v183 = vpop.f32.mrf.mxu0
  %v184 = vadd.f32 0.0, %v183
  %v185 = vpop.f32.mrf.mxu0
  %186 = vmatprep.mubr.f32.mxu0 0.0
  %187 = vmatmul.mubr.f32.gmra.mxu0 %v22
  %v188 = vpop.f32.mrf.mxu0
  %v189 = vadd.f32 0.0, %v188
  %v190 = vpop.f32.mrf.mxu0
  %191 = vmatprep.mubr.f32.mxu0 0.0
  %192 = vmatmul.mubr.f32.gmra.mxu0 %v23
  %v193 = vpop.f32.mrf.mxu0
  %v194 = vadd.f32 0.0, %v193
  %v195 = vpop.f32.mrf.mxu0
  %196 = vmatprep.mubr.f32.mxu0 0.0
  %197 = vmatmul.mubr.f32.gmra.mxu0 %v24
  %v198 = vpop.f32.mrf.mxu0
  %v199 = vadd.f32 0.0, %v198
  %v200 = vpop.f32.mrf.mxu0
  %201 = vmatprep.mubr.f32.mxu0 0.0
  %202 = vmatmul.mubr.f32.gmra.mxu0 %v25
  %v203 = vpop.f32.mrf.mxu0
  %v204 = vadd.f32 0.0, %v203
  %v205 = vpop.f32.mrf.mxu0
  %206 = vmatprep.mubr.f32.mxu0 0.0
  %207 = vmatmul.mubr.f32.gmra.mxu0 %v26
  %v208 = vpop.f32.mrf.mxu0
  %v209 = vadd.f32 0.0, %v208
  %v210 = vpop.f32.mrf.mxu0
  %211 = vmatprep.mubr.f32.mxu0 0.0
  %212 = vmatmul.mubr.f32.gmra.mxu0 %v27
  %v213 = vpop.f32.mrf.mxu0
  %v214 = vadd.f32 0.0, %v213
  %v215 = vpop.f32.mrf.mxu0
  %216 = vmatprep.mubr.f32.mxu0 0.0
  %217 = vmatmul.mubr.f32.gmra.mxu0 %v28
  %v218 = vpop.f32.mrf.mxu0
  %v219 = vadd.f32 0.0, %v218
  %v220 = vpop.f32.mrf.mxu0
  %221 = vmatprep.mubr.f32.mxu0 0.0
  %222 = vmatmul.mubr.f32.gmra.mxu0 %v29
  %v223 = vpop.f32.mrf.mxu0
  %v224 = vadd.f32 0.0, %v223
  %v225 = vpop.f32.mrf.mxu0
  %226 = vmatprep.mubr.f32.mxu0 0.0
  %227 = vmatmul.mubr.f32.gmra.mxu0 %v30
  %v228 = vpop.f32.mrf.mxu0
  %v229 = vadd.f32 0.0, %v228
  %v230 = vpop.f32.mrf.mxu0
  %231 = vmatprep.mubr.f32.mxu0 0.0
  %232 = vmatmul.mubr.f32.gmra.mxu0 %v31
  %v233 = vpop.f32.mrf.mxu0
  %v234 = vadd.f32 0.0, %v233
  %v235 = vpop.f32.mrf.mxu0
  %236 = vmatprep.mubr.f32.mxu0 0.0
  %237 = vmatmul.mubr.f32.gmra.mxu0 %v32
  %v238 = vpop.f32.mrf.mxu0
  %v239 = vadd.f32 0.0, %v238
  %v240 = vpop.f32.mrf.mxu0
  %241 = vmatprep.mubr.f32.mxu0 0.0
  %242 = vmatmul.mubr.f32.gmra.mxu0 %v33
  %v243 = vpop.f32.mrf.mxu0
  %v244 = vadd.f32 0.0, %v243
  %v245 = vpop.f32.mrf.mxu0
  %246 = vmatprep.mubr.f32.mxu0 0.0
  %247 = vmatmul.mubr.f32.gmra.mxu0 %v34
  %v248 = vpop.f32.mrf.mxu0
  %v249 = vadd.f32 0.0, %v248
  %v250 = vpop.f32.mrf.mxu0
  %251 = vmatprep.mubr.f32.mxu0 0.0
  %252 = vmatmul.mubr.f32.gmra.mxu0 %v35
  %v253 = vpop.f32.mrf.mxu0
  %v254 = vadd.f32 0.0, %v253
  %v255 = vpop.f32.mrf.mxu0
  %256 = vmatprep.mubr.f32.mxu0 0.0
  %257 = vmatmul.mubr.f32.gmra.mxu0 %v36
  %v258 = vpop.f32.mrf.mxu0
  %v259 = vadd.f32 0.0, %v258
  %v260 = vpop.f32.mrf.mxu0
  %261 = vmatprep.mubr.f32.mxu0 0.0
  %262 = vmatmul.mubr.f32.gmra.mxu0 %v37
  %v263 = vpop.f32.mrf.mxu0
  %v264 = vadd.f32 0.0, %v263
  %v265 = vpop.f32.mrf.mxu0
  %266 = vmatprep.mubr.f32.mxu0 0.0
  %267 = vmatmul.mubr.f32.gmra.mxu0 %v38
  %v268 = vpop.f32.mrf.mxu0
  %v269 = vadd.f32 0.0, %v268
  %v270 = vpop.f32.mrf.mxu0
  %271 = vmatprep.mubr.f32.mxu0 0.0
  %272 = vmatmul.mubr.f32.gmra.mxu0 %v39
  %v273 = vpop.f32.mrf.mxu0
  %v274 = vadd.f32 0.0, %v273
  %v275 = vpop.f32.mrf.mxu0
  %276 = vmatprep.mubr.f32.mxu0 0.0
  %277 = vmatmul.mubr.f32.gmra.mxu0 %v40
  %v278 = vpop.f32.mrf.mxu0
  %v279 = vadd.f32 0.0, %v278
  %v280 = vpop.f32.mrf.mxu0
  %281 = vmatprep.mubr.f32.mxu0 0.0
  %282 = vmatmul.mubr.f32.gmra.mxu0 %v41
  %v283 = vpop.f32.mrf.mxu0
  %v284 = vadd.f32 0.0, %v283
  %v285 = vpop.f32.mrf.mxu0
  %286 = vmatprep.mubr.f32.mxu0 0.0
  %287 = vmatmul.mubr.f32.gmra.mxu0 %v42
  %v288 = vpop.f32.mrf.mxu0
  %v289 = vadd.f32 0.0, %v288
  %v290 = vpop.f32.mrf.mxu0
  %291 = vmatprep.mubr.f32.mxu0 0.0
  %292 = vmatmul.mubr.f32.gmra.mxu0 %v43
  %v293 = vpop.f32.mrf.mxu0
  %v294 = vadd.f32 0.0, %v293
  %v295 = vpop.f32.mrf.mxu0
  %296 = vmatprep.mubr.f32.mxu0 0.0
  %297 = vmatmul.mubr.f32.gmra.mxu0 %v44
  %v298 = vpop.f32.mrf.mxu0
  %v299 = vadd.f32 0.0, %v298
  %v300 = vpop.f32.mrf.mxu0
  %301 = vmatprep.mubr.f32.mxu0 0.0
  %302 = vmatmul.mubr.f32.gmra.mxu0 %v45
  %v303 = vpop.f32.mrf.mxu0
  %v304 = vadd.f32 0.0, %v303
  %v305 = vpop.f32.mrf.mxu0
  %306 = vmatprep.mubr.f32.mxu0 0.0
  %307 = vmatmul.mubr.f32.gmra.mxu0 %v46
  %v308 = vpop.f32.mrf.mxu0
  %v309 = vadd.f32 0.0, %v308
  %v310 = vpop.f32.mrf.mxu0
  %311 = vmatprep.mubr.f32.mxu0 0.0
  %312 = vmatmul.mubr.f32.gmra.mxu0 %v47
  %v313 = vpop.f32.mrf.mxu0
  %v314 = vadd.f32 0.0, %v313
  %v315 = vpop.f32.mrf.mxu0
  %316 = vmatprep.mubr.f32.mxu0 0.0
  %317 = vmatmul.mubr.f32.gmra.mxu0 %v48
  %v318 = vpop.f32.mrf.mxu0
  %v319 = vadd.f32 0.0, %v318
  %v320 = vpop.f32.mrf.mxu0
  %321 = vmatprep.mubr.f32.mxu0 0.0
  %322 = vmatmul.mubr.f32.gmra.mxu0 %v49
  %v323 = vpop.f32.mrf.mxu0
  %v324 = vadd.f32 0.0, %v323
  %v325 = vpop.f32.mrf.mxu0
  %326 = vmatprep.mubr.f32.mxu0 0.0
  %327 = vmatmul.mubr.f32.gmra.mxu0 %v50
  %v328 = vpop.f32.mrf.mxu0
  %v329 = vadd.f32 0.0, %v328
  %v330 = vpop.f32.mrf.mxu0
  %331 = vmatprep.mubr.f32.mxu0 0.0
  %332 = vmatmul.mubr.f32.gmra.mxu0 %v51
  %v333 = vpop.f32.mrf.mxu0
  %v334 = vadd.f32 0.0, %v333
  %v335 = vpop.f32.mrf.mxu0
  %336 = vmatprep.mubr.f32.mxu0 0.0
  %337 = vmatmul.mubr.f32.gmra.mxu0 %v52
  %v338 = vpop.f32.mrf.mxu0
  %v339 = vadd.f32 0.0, %v338
  %v340 = vpop.f32.mrf.mxu0
  %341 = vmatprep.mubr.f32.mxu0 0.0
  %342 = vmatmul.mubr.f32.gmra.mxu0 %v53
  %v343 = vpop.f32.mrf.mxu0
  %v344 = vadd.f32 0.0, %v343
  %v345 = vpop.f32.mrf.mxu0
  %346 = vmatprep.mubr.f32.mxu0 0.0
  %347 = vmatmul.mubr.f32.gmra.mxu0 %v54
  %v348 = vpop.f32.mrf.mxu0
  %v349 = vadd.f32 0.0, %v348
  %v350 = vpop.f32.mrf.mxu0
  %351 = vmatprep.mubr.f32.mxu0 0.0
  %352 = vmatmul.mubr.f32.gmra.mxu0 %v55
  %v353 = vpop.f32.mrf.mxu0
  %v354 = vadd.f32 0.0, %v353
  %v355 = vpop.f32.mrf.mxu0
  %356 = vmatprep.mubr.f32.mxu0 0.0
  %357 = vmatmul.mubr.f32.gmra.mxu0 %v56
  %v358 = vpop.f32.mrf.mxu0
  %v359 = vadd.f32 0.0, %v358
  %v360 = vpop.f32.mrf.mxu0
  %361 = vmatprep.mubr.f32.mxu0 0.0
  %362 = vmatmul.mubr.f32.gmra.mxu0 %v57
  %v363 = vpop.f32.mrf.mxu0
  %v364 = vadd.f32 0.0, %v363
  %v365 = vpop.f32.mrf.mxu0
  %366 = vmatprep.mubr.f32.mxu0 0.0
  %367 = vmatmul.mubr.f32.gmra.mxu0 %v58
  %v368 = vpop.f32.mrf.mxu0
  %v369 = vadd.f32 0.0, %v368
  %v370 = vpop.f32.mrf.mxu0
  %371 = vmatprep.mubr.f32.mxu0 0.0
  %372 = vmatmul.mubr.f32.gmra.mxu0 %v59
  %v373 = vpop.f32.mrf.mxu0
  %v374 = vadd.f32 0.0, %v373
  %v375 = vpop.f32.mrf.mxu0
  %376 = vmatprep.mubr.f32.mxu0 0.0
  %377 = vmatmul.mubr.f32.gmra.mxu0 %v60
  %v378 = vpop.f32.mrf.mxu0
  %v379 = vadd.f32 0.0, %v378
  %v380 = vpop.f32.mrf.mxu0
  %381 = vmatprep.mubr.f32.mxu0 0.0
  %382 = vmatmul.mubr.f32.gmra.mxu0 %v61
  %v383 = vpop.f32.mrf.mxu0
  %v384 = vadd.f32 0.0, %v383
  %v385 = vpop.f32.mrf.mxu0
  %386 = vmatprep.mubr.f32.mxu0 0.0
  %387 = vmatmul.mubr.f32.gmra.mxu0 %v62
  %v388 = vpop.f32.mrf.mxu0
  %v389 = vadd.f32 0.0, %v388
  %v390 = vpop.f32.mrf.mxu0
  %391 = vmatprep.mubr.f32.mxu0 0.0
  %392 = vmatmul.mubr.f32.gmra.mxu0 %v63
  %v393 = vpop.f32.mrf.mxu0
  %v394 = vadd.f32 0.0, %v393
  %v395 = vpop.f32.mrf.mxu0
  %396 = vmatprep.mubr.f32.mxu0 0.0
  %397 = vmatmul.mubr.f32.gmra.mxu0 %v64
  %v398 = vpop.f32.mrf.mxu0
  %v399 = vadd.f32 0.0, %v398
  %v400 = vpop.f32.mrf.mxu0
  %401 = vmatprep.mubr.f32.mxu0 0.0
  %402 = vmatmul.mubr.f32.gmra.mxu0 %v65
  %v403 = vpop.f32.mrf.mxu0
  %v404 = vadd.f32 0.0, %v403
  %v405 = vpop.f32.mrf.mxu0
  %406 = vmatprep.mubr.f32.mxu0 0.0
  %407 = vmatmul.mubr.f32.gmra.mxu0 %v66
  %v408 = vpop.f32.mrf.mxu0
  %v409 = vadd.f32 0.0, %v408
  %v410 = vpop.f32.mrf.mxu0
  %411 = vmatprep.mubr.f32.mxu0 0.0
  %412 = vmatmul.mubr.f32.gmra.mxu0 %v67
  %v413 = vpop.f32.mrf.mxu0
  %v414 = vadd.f32 0.0, %v413
  %v415 = vpop.f32.mrf.mxu0
  %416 = vmatprep.mubr.f32.mxu0 0.0
  %417 = vmatmul.mubr.f32.gmra.mxu0 %v68
  %v418 = vpop.f32.mrf.mxu0
  %v419 = vadd.f32 0.0, %v418
  %v420 = vpop.f32.mrf.mxu0
  %421 = vmatprep.mubr.f32.mxu0 0.0
  %422 = vmatmul.mubr.f32.gmra.mxu0 %v69
  %v423 = vpop.f32.mrf.mxu0
  %v424 = vadd.f32 0.0, %v423
  %v425 = vpop.f32.mrf.mxu0
  %426 = vmatprep.mubr.f32.mxu0 0.0
  %427 = vmatmul.mubr.f32.gmra.mxu0 %v70
  %v428 = vpop.f32.mrf.mxu0
  %v429 = vadd.f32 0.0, %v428
  %v430 = vpop.f32.mrf.mxu0
  %431 = vmatprep.mubr.f32.mxu0 0.0
  %432 = vmatmul.mubr.f32.gmra.mxu0 %v71
  %v433 = vpop.f32.mrf.mxu0
  %v434 = vadd.f32 0.0, %v433
  %v435 = vpop.f32.mrf.mxu0
  %436 = vmatprep.mubr.f32.mxu0 0.0
  %437 = vmatmul.mubr.f32.gmra.mxu0 %v72
  %v438 = vpop.f32.mrf.mxu0
  %v439 = vadd.f32 0.0, %v438
  %v440 = vpop.f32.mrf.mxu0
  %441 = vmatprep.mubr.f32.mxu0 0.0
  %442 = vmatmul.mubr.f32.gmra.mxu0 %v73
  %v443 = vpop.f32.mrf.mxu0
  %v444 = vadd.f32 0.0, %v443
  %v445 = vpop.f32.mrf.mxu0
  %446 = vmatprep.mubr.f32.mxu0 0.0
  %447 = vmatmul.mubr.f32.gmra.mxu0 %v74
  %v448 = vpop.f32.mrf.mxu0
  %v449 = vadd.f32 0.0, %v448
  %v450 = vpop.f32.mrf.mxu0
  %451 = vmatprep.mubr.f32.mxu0 0.0
  %452 = vmatmul.mubr.f32.gmra.mxu0 %v75
  %v453 = vpop.f32.mrf.mxu0
  %v454 = vadd.f32 0.0, %v453
  %v455 = vpop.f32.mrf.mxu0
  %456 = vmatprep.mubr.f32.mxu0 0.0
  %457 = vmatmul.mubr.f32.gmra.mxu0 %v76
  %v458 = vpop.f32.mrf.mxu0
  %v459 = vadd.f32 0.0, %v458
  %v460 = vpop.f32.mrf.mxu0
  %461 = vmatprep.mubr.f32.mxu0 0.0
  %462 = vmatmul.mubr.f32.gmra.mxu0 %v77
  %v463 = vpop.f32.mrf.mxu0
  %v464 = vadd.f32 0.0, %v463
  %v465 = vpop.f32.mrf.mxu0
  %466 = vmatprep.mubr.f32.mxu0 0.0
  %467 = vmatmul.mubr.f32.gmra.mxu0 %v78
  %v468 = vpop.f32.mrf.mxu0
  %v469 = vadd.f32 0.0, %v468
  %v470 = vpop.f32.mrf.mxu0
  %471 = vmatprep.mubr.f32.mxu0 0.0
  %472 = vmatmul.mubr.f32.gmra.mxu0 %v79
  %v473 = vpop.f32.mrf.mxu0
  %v474 = vadd.f32 0.0, %v473
  %v475 = vpop.f32.mrf.mxu0
  %476 = vmatprep.mubr.f32.mxu0 0.0
  %477 = vmatmul.mubr.f32.gmra.mxu0 %v80
  %v478 = vpop.f32.mrf.mxu0
  %v479 = vadd.f32 0.0, %v478
  %v480 = vpop.f32.mrf.mxu0
  %481 = vdwg.mxu0
  %v482 = vadd.f32 %v164, %v169
  %v483 = vadd.f32 %v482, %v174
  %v484 = vadd.f32 %v483, %v179
  %v485 = vadd.f32 %v484, %v184
  %v486 = vadd.f32 %v485, %v189
  %v487 = vadd.f32 %v486, %v194
  %v488 = vadd.f32 %v487, %v199
  %v489 = vadd.f32 %v488, %v204
  %v490 = vadd.f32 %v489, %v209
  %v491 = vadd.f32 %v490, %v214
  %v492 = vadd.f32 %v491, %v219
  %v493 = vadd.f32 %v492, %v224
  %v494 = vadd.f32 %v493, %v229
  %v495 = vadd.f32 %v494, %v234
  %v496 = vadd.f32 %v495, %v239
  %v497 = vadd.f32 %v496, %v244
  %v498 = vadd.f32 %v497, %v249
  %v499 = vadd.f32 %v498, %v254
  %v500 = vadd.f32 %v499, %v259
  %v501 = vadd.f32 %v500, %v264
  %v502 = vadd.f32 %v501, %v269
  %v503 = vadd.f32 %v502, %v274
  %v504 = vadd.f32 %v503, %v279
  %v505 = vadd.f32 %v504, %v284
  %v506 = vadd.f32 %v505, %v289
  %v507 = vadd.f32 %v506, %v294
  %v508 = vadd.f32 %v507, %v299
  %v509 = vadd.f32 %v508, %v304
  %v510 = vadd.f32 %v509, %v309
  %v511 = vadd.f32 %v510, %v314
  %v512 = vadd.f32 %v511, %v319
  %v513 = vadd.f32 %v512, %v324
  %v514 = vadd.f32 %v513, %v329
  %v515 = vadd.f32 %v514, %v334
  %v516 = vadd.f32 %v515, %v339
  %v517 = vadd.f32 %v516, %v344
  %v518 = vadd.f32 %v517, %v349
  %v519 = vadd.f32 %v518, %v354
  %v520 = vadd.f32 %v519, %v359
  %v521 = vadd.f32 %v520, %v364
  %v522 = vadd.f32 %v521, %v369
  %v523 = vadd.f32 %v522, %v374
  %v524 = vadd.f32 %v523, %v379
  %v525 = vadd.f32 %v524, %v384
  %v526 = vadd.f32 %v525, %v389
  %v527 = vadd.f32 %v526, %v394
  %v528 = vadd.f32 %v527, %v399
  %v529 = vadd.f32 %v528, %v404
  %v530 = vadd.f32 %v529, %v409
  %v531 = vadd.f32 %v530, %v414
  %v532 = vadd.f32 %v531, %v419
  %v533 = vadd.f32 %v532, %v424
  %v534 = vadd.f32 %v533, %v429
  %v535 = vadd.f32 %v534, %v434
  %v536 = vadd.f32 %v535, %v439
  %v537 = vadd.f32 %v536, %v444
  %v538 = vadd.f32 %v537, %v449
  %v539 = vadd.f32 %v538, %v454
  %v540 = vadd.f32 %v539, %v459
  %v541 = vadd.f32 %v540, %v464
  %v542 = vadd.f32 %v541, %v469
  %v543 = vadd.f32 %v542, %v474
  %v544 = vadd.f32 %v543, %v479
  %v545 = vrot.slane %v544, 4
  %v546 = vadd.f32 %v544, %v545
  %v547 = vrot.slane %v546, 2
  %v548 = vadd.f32 %v546, %v547
  %v549 = vrot.slane %v548, 1
  %v550 = vadd.f32 %v548, %v549
  %v551 = vmul.f32 %v550, 0.001953125
  %v552 = vmul.f32 %v164, %v164
  %v553 = vmul.f32 %v169, %v169
  %v554 = vmul.f32 %v174, %v174
  %v555 = vmul.f32 %v179, %v179
  %v556 = vmul.f32 %v184, %v184
  %v557 = vmul.f32 %v189, %v189
  %v558 = vmul.f32 %v194, %v194
  %v559 = vmul.f32 %v199, %v199
  %v560 = vmul.f32 %v204, %v204
  %v561 = vmul.f32 %v209, %v209
  %v562 = vmul.f32 %v214, %v214
  %v563 = vmul.f32 %v219, %v219
  %v564 = vmul.f32 %v224, %v224
  %v565 = vmul.f32 %v229, %v229
  %v566 = vmul.f32 %v234, %v234
  %v567 = vmul.f32 %v239, %v239
  %v568 = vmul.f32 %v244, %v244
  %v569 = vmul.f32 %v249, %v249
  %v570 = vmul.f32 %v254, %v254
  %v571 = vmul.f32 %v259, %v259
  %v572 = vmul.f32 %v264, %v264
  %v573 = vmul.f32 %v269, %v269
  %v574 = vmul.f32 %v274, %v274
  %v575 = vmul.f32 %v279, %v279
  %v576 = vmul.f32 %v284, %v284
  %v577 = vmul.f32 %v289, %v289
  %v578 = vmul.f32 %v294, %v294
  %v579 = vmul.f32 %v299, %v299
  %v580 = vmul.f32 %v304, %v304
  %v581 = vmul.f32 %v309, %v309
  %v582 = vmul.f32 %v314, %v314
  %v583 = vmul.f32 %v319, %v319
  %v584 = vmul.f32 %v324, %v324
  %v585 = vmul.f32 %v329, %v329
  %v586 = vmul.f32 %v334, %v334
  %v587 = vmul.f32 %v339, %v339
  %v588 = vmul.f32 %v344, %v344
  %v589 = vmul.f32 %v349, %v349
  %v590 = vmul.f32 %v354, %v354
  %v591 = vmul.f32 %v359, %v359
  %v592 = vmul.f32 %v364, %v364
  %v593 = vmul.f32 %v369, %v369
  %v594 = vmul.f32 %v374, %v374
  %v595 = vmul.f32 %v379, %v379
  %v596 = vmul.f32 %v384, %v384
  %v597 = vmul.f32 %v389, %v389
  %v598 = vmul.f32 %v394, %v394
  %v599 = vmul.f32 %v399, %v399
  %v600 = vmul.f32 %v404, %v404
  %v601 = vmul.f32 %v409, %v409
  %v602 = vmul.f32 %v414, %v414
  %v603 = vmul.f32 %v419, %v419
  %v604 = vmul.f32 %v424, %v424
  %v605 = vmul.f32 %v429, %v429
  %v606 = vmul.f32 %v434, %v434
  %v607 = vmul.f32 %v439, %v439
  %v608 = vmul.f32 %v444, %v444
  %v609 = vmul.f32 %v449, %v449
  %v610 = vmul.f32 %v454, %v454
  %v611 = vmul.f32 %v459, %v459
  %v612 = vmul.f32 %v464, %v464
  %v613 = vmul.f32 %v469, %v469
  %v614 = vmul.f32 %v474, %v474
  %v615 = vmul.f32 %v479, %v479
  %v616 = vadd.f32 %v552, %v553
  %v617 = vadd.f32 %v616, %v554
  %v618 = vadd.f32 %v617, %v555
  %v619 = vadd.f32 %v618, %v556
  %v620 = vadd.f32 %v619, %v557
  %v621 = vadd.f32 %v620, %v558
  %v622 = vadd.f32 %v621, %v559
  %v623 = vadd.f32 %v622, %v560
  %v624 = vadd.f32 %v623, %v561
  %v625 = vadd.f32 %v624, %v562
  %v626 = vadd.f32 %v625, %v563
  %v627 = vadd.f32 %v626, %v564
  %v628 = vadd.f32 %v627, %v565
  %v629 = vadd.f32 %v628, %v566
  %v630 = vadd.f32 %v629, %v567
  %v631 = vadd.f32 %v630, %v568
  %v632 = vadd.f32 %v631, %v569
  %v633 = vadd.f32 %v632, %v570
  %v634 = vadd.f32 %v633, %v571
  %v635 = vadd.f32 %v634, %v572
  %v636 = vadd.f32 %v635, %v573
  %v637 = vadd.f32 %v636, %v574
  %v638 = vadd.f32 %v637, %v575
  %v639 = vadd.f32 %v638, %v576
  %v640 = vadd.f32 %v639, %v577
  %v641 = vadd.f32 %v640, %v578
  %v642 = vadd.f32 %v641, %v579
  %v643 = vadd.f32 %v642, %v580
  %v644 = vadd.f32 %v643, %v581
  %v645 = vadd.f32 %v644, %v582
  %v646 = vadd.f32 %v645, %v583
  %v647 = vadd.f32 %v646, %v584
  %v648 = vadd.f32 %v647, %v585
  %v649 = vadd.f32 %v648, %v586
  %v650 = vadd.f32 %v649, %v587
  %v651 = vadd.f32 %v650, %v588
  %v652 = vadd.f32 %v651, %v589
  %v653 = vadd.f32 %v652, %v590
  %v654 = vadd.f32 %v653, %v591
  %v655 = vadd.f32 %v654, %v592
  %v656 = vadd.f32 %v655, %v593
  %v657 = vadd.f32 %v656, %v594
  %v658 = vadd.f32 %v657, %v595
  %v659 = vadd.f32 %v658, %v596
  %v660 = vadd.f32 %v659, %v597
  %v661 = vadd.f32 %v660, %v598
  %v662 = vadd.f32 %v661, %v599
  %v663 = vadd.f32 %v662, %v600
  %v664 = vadd.f32 %v663, %v601
  %v665 = vadd.f32 %v664, %v602
  %v666 = vadd.f32 %v665, %v603
  %v667 = vadd.f32 %v666, %v604
  %v668 = vadd.f32 %v667, %v605
  %v669 = vadd.f32 %v668, %v606
  %v670 = vadd.f32 %v669, %v607
  %v671 = vadd.f32 %v670, %v608
  %v672 = vadd.f32 %v671, %v609
  %v673 = vadd.f32 %v672, %v610
  %v674 = vadd.f32 %v673, %v611
  %v675 = vadd.f32 %v674, %v612
  %v676 = vadd.f32 %v675, %v613
  %v677 = vadd.f32 %v676, %v614
  %v678 = vadd.f32 %v677, %v615
  %v679 = vrot.slane %v678, 4
  %v680 = vadd.f32 %v678, %v679
  %v681 = vrot.slane %v680, 2
  %v682 = vadd.f32 %v680, %v681
  %v683 = vrot.slane %v682, 1
  %v684 = vadd.f32 %v682, %v683
  %v685 = vmul.f32 %v684, 0.001953125
  %v686 = vmul.f32 %v551, %v551
  %v687 = vsub.f32 %v685, %v686
  %v688 = vmax.f32 %v687, 0.0
  %v689 = vld [vmem:[%s2] sm:$0x1]
  %v690 = vadd.f32 %v688, 1e-05
  %v691 = vrsqrt.pop %v690
  %v692 = vmul.f32 %v689, %v691
  %v693 = vld [vmem:[%s3] sm:$0x1]
  %v694 = vmul.f32 %v551, %v692
  %v695 = vsub.f32 %v693, %v694
  %v697 = vlaneseq
  %v698 = vshrl.u32 %v697, 7
  %v699 = vsub.s32 0, %v698
  %v700 = vrot.slane %v692, %v699
  %v702 = vmul.f32 %v164, %v700
  %v703 = vmul.f32 %v169, %v700
  %v704 = vmul.f32 %v174, %v700
  %v705 = vmul.f32 %v179, %v700
  %v706 = vmul.f32 %v184, %v700
  %v707 = vmul.f32 %v189, %v700
  %v708 = vmul.f32 %v194, %v700
  %v709 = vmul.f32 %v199, %v700
  %v710 = vmul.f32 %v204, %v700
  %v711 = vmul.f32 %v209, %v700
  %v712 = vmul.f32 %v214, %v700
  %v713 = vmul.f32 %v219, %v700
  %v714 = vmul.f32 %v224, %v700
  %v715 = vmul.f32 %v229, %v700
  %v716 = vmul.f32 %v234, %v700
  %v717 = vmul.f32 %v239, %v700
  %v718 = vmul.f32 %v244, %v700
  %v719 = vmul.f32 %v249, %v700
  %v720 = vmul.f32 %v254, %v700
  %v721 = vmul.f32 %v259, %v700
  %v722 = vmul.f32 %v264, %v700
  %v723 = vmul.f32 %v269, %v700
  %v724 = vmul.f32 %v274, %v700
  %v725 = vmul.f32 %v279, %v700
  %v726 = vmul.f32 %v284, %v700
  %v727 = vmul.f32 %v289, %v700
  %v728 = vmul.f32 %v294, %v700
  %v729 = vmul.f32 %v299, %v700
  %v730 = vmul.f32 %v304, %v700
  %v731 = vmul.f32 %v309, %v700
  %v732 = vmul.f32 %v314, %v700
  %v733 = vmul.f32 %v319, %v700
  %v734 = vmul.f32 %v324, %v700
  %v735 = vmul.f32 %v329, %v700
  %v736 = vmul.f32 %v334, %v700
  %v737 = vmul.f32 %v339, %v700
  %v738 = vmul.f32 %v344, %v700
  %v739 = vmul.f32 %v349, %v700
  %v740 = vmul.f32 %v354, %v700
  %v741 = vmul.f32 %v359, %v700
  %v742 = vmul.f32 %v364, %v700
  %v743 = vmul.f32 %v369, %v700
  %v744 = vmul.f32 %v374, %v700
  %v745 = vmul.f32 %v379, %v700
  %v746 = vmul.f32 %v384, %v700
  %v747 = vmul.f32 %v389, %v700
  %v748 = vmul.f32 %v394, %v700
  %v749 = vmul.f32 %v399, %v700
  %v750 = vmul.f32 %v404, %v700
  %v751 = vmul.f32 %v409, %v700
  %v752 = vmul.f32 %v414, %v700
  %v753 = vmul.f32 %v419, %v700
  %v754 = vmul.f32 %v424, %v700
  %v755 = vmul.f32 %v429, %v700
  %v756 = vmul.f32 %v434, %v700
  %v757 = vmul.f32 %v439, %v700
  %v758 = vmul.f32 %v444, %v700
  %v759 = vmul.f32 %v449, %v700
  %v760 = vmul.f32 %v454, %v700
  %v761 = vmul.f32 %v459, %v700
  %v762 = vmul.f32 %v464, %v700
  %v763 = vmul.f32 %v469, %v700
  %v764 = vmul.f32 %v474, %v700
  %v765 = vmul.f32 %v479, %v700
  %v767 = vlaneseq
  %v768 = vshrl.u32 %v767, 7
  %v769 = vsub.s32 0, %v768
  %v770 = vrot.slane %v695, %v769
  %v772 = vadd.f32 %v702, %v770
  %v773 = vadd.f32 %v703, %v770
  %v774 = vadd.f32 %v704, %v770
  %v775 = vadd.f32 %v705, %v770
  %v776 = vadd.f32 %v706, %v770
  %v777 = vadd.f32 %v707, %v770
  %v778 = vadd.f32 %v708, %v770
  %v779 = vadd.f32 %v709, %v770
  %v780 = vadd.f32 %v710, %v770
  %v781 = vadd.f32 %v711, %v770
  %v782 = vadd.f32 %v712, %v770
  %v783 = vadd.f32 %v713, %v770
  %v784 = vadd.f32 %v714, %v770
  %v785 = vadd.f32 %v715, %v770
  %v786 = vadd.f32 %v716, %v770
  %v787 = vadd.f32 %v717, %v770
  %v788 = vadd.f32 %v718, %v770
  %v789 = vadd.f32 %v719, %v770
  %v790 = vadd.f32 %v720, %v770
  %v791 = vadd.f32 %v721, %v770
  %v792 = vadd.f32 %v722, %v770
  %v793 = vadd.f32 %v723, %v770
  %v794 = vadd.f32 %v724, %v770
  %v795 = vadd.f32 %v725, %v770
  %v796 = vadd.f32 %v726, %v770
  %v797 = vadd.f32 %v727, %v770
  %v798 = vadd.f32 %v728, %v770
  %v799 = vadd.f32 %v729, %v770
  %v800 = vadd.f32 %v730, %v770
  %v801 = vadd.f32 %v731, %v770
  %v802 = vadd.f32 %v732, %v770
  %v803 = vadd.f32 %v733, %v770
  %v804 = vadd.f32 %v734, %v770
  %v805 = vadd.f32 %v735, %v770
  %v806 = vadd.f32 %v736, %v770
  %v807 = vadd.f32 %v737, %v770
  %v808 = vadd.f32 %v738, %v770
  %v809 = vadd.f32 %v739, %v770
  %v810 = vadd.f32 %v740, %v770
  %v811 = vadd.f32 %v741, %v770
  %v812 = vadd.f32 %v742, %v770
  %v813 = vadd.f32 %v743, %v770
  %v814 = vadd.f32 %v744, %v770
  %v815 = vadd.f32 %v745, %v770
  %v816 = vadd.f32 %v746, %v770
  %v817 = vadd.f32 %v747, %v770
  %v818 = vadd.f32 %v748, %v770
  %v819 = vadd.f32 %v749, %v770
  %v820 = vadd.f32 %v750, %v770
  %v821 = vadd.f32 %v751, %v770
  %v822 = vadd.f32 %v752, %v770
  %v823 = vadd.f32 %v753, %v770
  %v824 = vadd.f32 %v754, %v770
  %v825 = vadd.f32 %v755, %v770
  %v826 = vadd.f32 %v756, %v770
  %v827 = vadd.f32 %v757, %v770
  %v828 = vadd.f32 %v758, %v770
  %v829 = vadd.f32 %v759, %v770
  %v830 = vadd.f32 %v760, %v770
  %v831 = vadd.f32 %v761, %v770
  %v832 = vadd.f32 %v762, %v770
  %v833 = vadd.f32 %v763, %v770
  %v834 = vadd.f32 %v764, %v770
  %v835 = vadd.f32 %v765, %v770
  %vm836 = vcmp.ge.f32.partialorder %v772, 0.0
  %vm837 = vcmp.ge.f32.partialorder %v773, 0.0
  %vm838 = vcmp.ge.f32.partialorder %v774, 0.0
  %vm839 = vcmp.ge.f32.partialorder %v775, 0.0
  %vm840 = vcmp.ge.f32.partialorder %v776, 0.0
  %vm841 = vcmp.ge.f32.partialorder %v777, 0.0
  %vm842 = vcmp.ge.f32.partialorder %v778, 0.0
  %vm843 = vcmp.ge.f32.partialorder %v779, 0.0
  %vm844 = vcmp.ge.f32.partialorder %v780, 0.0
  %vm845 = vcmp.ge.f32.partialorder %v781, 0.0
  %vm846 = vcmp.ge.f32.partialorder %v782, 0.0
  %vm847 = vcmp.ge.f32.partialorder %v783, 0.0
  %vm848 = vcmp.ge.f32.partialorder %v784, 0.0
  %vm849 = vcmp.ge.f32.partialorder %v785, 0.0
  %vm850 = vcmp.ge.f32.partialorder %v786, 0.0
  %vm851 = vcmp.ge.f32.partialorder %v787, 0.0
  %vm852 = vcmp.ge.f32.partialorder %v788, 0.0
  %vm853 = vcmp.ge.f32.partialorder %v789, 0.0
  %vm854 = vcmp.ge.f32.partialorder %v790, 0.0
  %vm855 = vcmp.ge.f32.partialorder %v791, 0.0
  %vm856 = vcmp.ge.f32.partialorder %v792, 0.0
  %vm857 = vcmp.ge.f32.partialorder %v793, 0.0
  %vm858 = vcmp.ge.f32.partialorder %v794, 0.0
  %vm859 = vcmp.ge.f32.partialorder %v795, 0.0
  %vm860 = vcmp.ge.f32.partialorder %v796, 0.0
  %vm861 = vcmp.ge.f32.partialorder %v797, 0.0
  %vm862 = vcmp.ge.f32.partialorder %v798, 0.0
  %vm863 = vcmp.ge.f32.partialorder %v799, 0.0
  %vm864 = vcmp.ge.f32.partialorder %v800, 0.0
  %vm865 = vcmp.ge.f32.partialorder %v801, 0.0
  %vm866 = vcmp.ge.f32.partialorder %v802, 0.0
  %vm867 = vcmp.ge.f32.partialorder %v803, 0.0
  %vm868 = vcmp.ge.f32.partialorder %v804, 0.0
  %vm869 = vcmp.ge.f32.partialorder %v805, 0.0
  %vm870 = vcmp.ge.f32.partialorder %v806, 0.0
  %vm871 = vcmp.ge.f32.partialorder %v807, 0.0
  %vm872 = vcmp.ge.f32.partialorder %v808, 0.0
  %vm873 = vcmp.ge.f32.partialorder %v809, 0.0
  %vm874 = vcmp.ge.f32.partialorder %v810, 0.0
  %vm875 = vcmp.ge.f32.partialorder %v811, 0.0
  %vm876 = vcmp.ge.f32.partialorder %v812, 0.0
  %vm877 = vcmp.ge.f32.partialorder %v813, 0.0
  %vm878 = vcmp.ge.f32.partialorder %v814, 0.0
  %vm879 = vcmp.ge.f32.partialorder %v815, 0.0
  %vm880 = vcmp.ge.f32.partialorder %v816, 0.0
  %vm881 = vcmp.ge.f32.partialorder %v817, 0.0
  %vm882 = vcmp.ge.f32.partialorder %v818, 0.0
  %vm883 = vcmp.ge.f32.partialorder %v819, 0.0
  %vm884 = vcmp.ge.f32.partialorder %v820, 0.0
  %vm885 = vcmp.ge.f32.partialorder %v821, 0.0
  %vm886 = vcmp.ge.f32.partialorder %v822, 0.0
  %vm887 = vcmp.ge.f32.partialorder %v823, 0.0
  %vm888 = vcmp.ge.f32.partialorder %v824, 0.0
  %vm889 = vcmp.ge.f32.partialorder %v825, 0.0
  %vm890 = vcmp.ge.f32.partialorder %v826, 0.0
  %vm891 = vcmp.ge.f32.partialorder %v827, 0.0
  %vm892 = vcmp.ge.f32.partialorder %v828, 0.0
  %vm893 = vcmp.ge.f32.partialorder %v829, 0.0
  %vm894 = vcmp.ge.f32.partialorder %v830, 0.0
  %vm895 = vcmp.ge.f32.partialorder %v831, 0.0
  %vm896 = vcmp.ge.f32.partialorder %v832, 0.0
  %vm897 = vcmp.ge.f32.partialorder %v833, 0.0
  %vm898 = vcmp.ge.f32.partialorder %v834, 0.0
  %vm899 = vcmp.ge.f32.partialorder %v835, 0.0
  %v900 = vmul.f32 %v772, 0.1
  %v901 = vmul.f32 %v773, 0.1
  %v902 = vmul.f32 %v774, 0.1
  %v903 = vmul.f32 %v775, 0.1
  %v904 = vmul.f32 %v776, 0.1
  %v905 = vmul.f32 %v777, 0.1
  %v906 = vmul.f32 %v778, 0.1
  %v907 = vmul.f32 %v779, 0.1
  %v908 = vmul.f32 %v780, 0.1
  %v909 = vmul.f32 %v781, 0.1
  %v910 = vmul.f32 %v782, 0.1
  %v911 = vmul.f32 %v783, 0.1
  %v912 = vmul.f32 %v784, 0.1
  %v913 = vmul.f32 %v785, 0.1
  %v914 = vmul.f32 %v786, 0.1
  %v915 = vmul.f32 %v787, 0.1
  %v916 = vmul.f32 %v788, 0.1
  %v917 = vmul.f32 %v789, 0.1
  %v918 = vmul.f32 %v790, 0.1
  %v919 = vmul.f32 %v791, 0.1
  %v920 = vmul.f32 %v792, 0.1
  %v921 = vmul.f32 %v793, 0.1
  %v922 = vmul.f32 %v794, 0.1
  %v923 = vmul.f32 %v795, 0.1
  %v924 = vmul.f32 %v796, 0.1
  %v925 = vmul.f32 %v797, 0.1
  %v926 = vmul.f32 %v798, 0.1
  %v927 = vmul.f32 %v799, 0.1
  %v928 = vmul.f32 %v800, 0.1
  %v929 = vmul.f32 %v801, 0.1
  %v930 = vmul.f32 %v802, 0.1
  %v931 = vmul.f32 %v803, 0.1
  %v932 = vmul.f32 %v804, 0.1
  %v933 = vmul.f32 %v805, 0.1
  %v934 = vmul.f32 %v806, 0.1
  %v935 = vmul.f32 %v807, 0.1
  %v936 = vmul.f32 %v808, 0.1
  %v937 = vmul.f32 %v809, 0.1
  %v938 = vmul.f32 %v810, 0.1
  %v939 = vmul.f32 %v811, 0.1
  %v940 = vmul.f32 %v812, 0.1
  %v941 = vmul.f32 %v813, 0.1
  %v942 = vmul.f32 %v814, 0.1
  %v943 = vmul.f32 %v815, 0.1
  %v944 = vmul.f32 %v816, 0.1
  %v945 = vmul.f32 %v817, 0.1
  %v946 = vmul.f32 %v818, 0.1
  %v947 = vmul.f32 %v819, 0.1
  %v948 = vmul.f32 %v820, 0.1
  %v949 = vmul.f32 %v821, 0.1
  %v950 = vmul.f32 %v822, 0.1
  %v951 = vmul.f32 %v823, 0.1
  %v952 = vmul.f32 %v824, 0.1
  %v953 = vmul.f32 %v825, 0.1
  %v954 = vmul.f32 %v826, 0.1
  %v955 = vmul.f32 %v827, 0.1
  %v956 = vmul.f32 %v828, 0.1
  %v957 = vmul.f32 %v829, 0.1
  %v958 = vmul.f32 %v830, 0.1
  %v959 = vmul.f32 %v831, 0.1
  %v960 = vmul.f32 %v832, 0.1
  %v961 = vmul.f32 %v833, 0.1
  %v962 = vmul.f32 %v834, 0.1
  %v963 = vmul.f32 %v835, 0.1
  %v964 = vsel %vm836, %v772, %v900
  %v965 = vsel %vm837, %v773, %v901
  %v966 = vsel %vm838, %v774, %v902
  %v967 = vsel %vm839, %v775, %v903
  %v968 = vsel %vm840, %v776, %v904
  %v969 = vsel %vm841, %v777, %v905
  %v970 = vsel %vm842, %v778, %v906
  %v971 = vsel %vm843, %v779, %v907
  %v972 = vsel %vm844, %v780, %v908
  %v973 = vsel %vm845, %v781, %v909
  %v974 = vsel %vm846, %v782, %v910
  %v975 = vsel %vm847, %v783, %v911
  %v976 = vsel %vm848, %v784, %v912
  %v977 = vsel %vm849, %v785, %v913
  %v978 = vsel %vm850, %v786, %v914
  %v979 = vsel %vm851, %v787, %v915
  %v980 = vsel %vm852, %v788, %v916
  %v981 = vsel %vm853, %v789, %v917
  %v982 = vsel %vm854, %v790, %v918
  %v983 = vsel %vm855, %v791, %v919
  %v984 = vsel %vm856, %v792, %v920
  %v985 = vsel %vm857, %v793, %v921
  %v986 = vsel %vm858, %v794, %v922
  %v987 = vsel %vm859, %v795, %v923
  %v988 = vsel %vm860, %v796, %v924
  %v989 = vsel %vm861, %v797, %v925
  %v990 = vsel %vm862, %v798, %v926
  %v991 = vsel %vm863, %v799, %v927
  %v992 = vsel %vm864, %v800, %v928
  %v993 = vsel %vm865, %v801, %v929
  %v994 = vsel %vm866, %v802, %v930
  %v995 = vsel %vm867, %v803, %v931
  %v996 = vsel %vm868, %v804, %v932
  %v997 = vsel %vm869, %v805, %v933
  %v998 = vsel %vm870, %v806, %v934
  %v999 = vsel %vm871, %v807, %v935
  %v1000 = vsel %vm872, %v808, %v936
  %v1001 = vsel %vm873, %v809, %v937
  %v1002 = vsel %vm874, %v810, %v938
  %v1003 = vsel %vm875, %v811, %v939
  %v1004 = vsel %vm876, %v812, %v940
  %v1005 = vsel %vm877, %v813, %v941
  %v1006 = vsel %vm878, %v814, %v942
  %v1007 = vsel %vm879, %v815, %v943
  %v1008 = vsel %vm880, %v816, %v944
  %v1009 = vsel %vm881, %v817, %v945
  %v1010 = vsel %vm882, %v818, %v946
  %v1011 = vsel %vm883, %v819, %v947
  %v1012 = vsel %vm884, %v820, %v948
  %v1013 = vsel %vm885, %v821, %v949
  %v1014 = vsel %vm886, %v822, %v950
  %v1015 = vsel %vm887, %v823, %v951
  %v1016 = vsel %vm888, %v824, %v952
  %v1017 = vsel %vm889, %v825, %v953
  %v1018 = vsel %vm890, %v826, %v954
  %v1019 = vsel %vm891, %v827, %v955
  %v1020 = vsel %vm892, %v828, %v956
  %v1021 = vsel %vm893, %v829, %v957
  %v1022 = vsel %vm894, %v830, %v958
  %v1023 = vsel %vm895, %v831, %v959
  %v1024 = vsel %vm896, %v832, %v960
  %v1025 = vsel %vm897, %v833, %v961
  %v1026 = vsel %vm898, %v834, %v962
  %v1027 = vsel %vm899, %v835, %v963
  %1028 = vst [vmem:[%s4] sm:$0xff] %v964
  %1029 = vst [vmem:[%s4 + $0x8] sm:$0xff] %v965
  %1030 = vst [vmem:[%s4 + $0x10] sm:$0xff] %v966
  %1031 = vst [vmem:[%s4 + $0x18] sm:$0xff] %v967
  %1032 = vst [vmem:[%s4 + $0x20] sm:$0xff] %v968
  %1033 = vst [vmem:[%s4 + $0x28] sm:$0xff] %v969
  %1034 = vst [vmem:[%s4 + $0x30] sm:$0xff] %v970
  %1035 = vst [vmem:[%s4 + $0x38] sm:$0xff] %v971
  %1036 = vst [vmem:[%s4 + $0x40] sm:$0xff] %v972
  %1037 = vst [vmem:[%s4 + $0x48] sm:$0xff] %v973
  %1038 = vst [vmem:[%s4 + $0x50] sm:$0xff] %v974
  %1039 = vst [vmem:[%s4 + $0x58] sm:$0xff] %v975
  %1040 = vst [vmem:[%s4 + $0x60] sm:$0xff] %v976
  %1041 = vst [vmem:[%s4 + $0x68] sm:$0xff] %v977
  %1042 = vst [vmem:[%s4 + $0x70] sm:$0xff] %v978
  %1043 = vst [vmem:[%s4 + $0x78] sm:$0xff] %v979
  %1044 = vst [vmem:[%s4 + $0x80] sm:$0xff] %v980
  %1045 = vst [vmem:[%s4 + $0x88] sm:$0xff] %v981
  %1046 = vst [vmem:[%s4 + $0x90] sm:$0xff] %v982
  %1047 = vst [vmem:[%s4 + $0x98] sm:$0xff] %v983
  %1048 = vst [vmem:[%s4 + $0xa0] sm:$0xff] %v984
  %1049 = vst [vmem:[%s4 + $0xa8] sm:$0xff] %v985
  %1050 = vst [vmem:[%s4 + $0xb0] sm:$0xff] %v986
  %1051 = vst [vmem:[%s4 + $0xb8] sm:$0xff] %v987
  %1052 = vst [vmem:[%s4 + $0xc0] sm:$0xff] %v988
  %1053 = vst [vmem:[%s4 + $0xc8] sm:$0xff] %v989
  %1054 = vst [vmem:[%s4 + $0xd0] sm:$0xff] %v990
  %1055 = vst [vmem:[%s4 + $0xd8] sm:$0xff] %v991
  %1056 = vst [vmem:[%s4 + $0xe0] sm:$0xff] %v992
  %1057 = vst [vmem:[%s4 + $0xe8] sm:$0xff] %v993
  %1058 = vst [vmem:[%s4 + $0xf0] sm:$0xff] %v994
  %1059 = vst [vmem:[%s4 + $0xf8] sm:$0xff] %v995
  %1060 = vst [vmem:[%s4 + $0x100] sm:$0xff] %v996
  %1061 = vst [vmem:[%s4 + $0x108] sm:$0xff] %v997
  %1062 = vst [vmem:[%s4 + $0x110] sm:$0xff] %v998
  %1063 = vst [vmem:[%s4 + $0x118] sm:$0xff] %v999
  %1064 = vst [vmem:[%s4 + $0x120] sm:$0xff] %v1000
  %1065 = vst [vmem:[%s4 + $0x128] sm:$0xff] %v1001
  %1066 = vst [vmem:[%s4 + $0x130] sm:$0xff] %v1002
  %1067 = vst [vmem:[%s4 + $0x138] sm:$0xff] %v1003
  %1068 = vst [vmem:[%s4 + $0x140] sm:$0xff] %v1004
  %1069 = vst [vmem:[%s4 + $0x148] sm:$0xff] %v1005
  %1070 = vst [vmem:[%s4 + $0x150] sm:$0xff] %v1006
  %1071 = vst [vmem:[%s4 + $0x158] sm:$0xff] %v1007
  %1072 = vst [vmem:[%s4 + $0x160] sm:$0xff] %v1008
  %1073 = vst [vmem:[%s4 + $0x168] sm:$0xff] %v1009
  %1074 = vst [vmem:[%s4 + $0x170] sm:$0xff] %v1010
  %1075 = vst [vmem:[%s4 + $0x178] sm:$0xff] %v1011
  %1076 = vst [vmem:[%s4 + $0x180] sm:$0xff] %v1012
  %1077 = vst [vmem:[%s4 + $0x188] sm:$0xff] %v1013
  %1078 = vst [vmem:[%s4 + $0x190] sm:$0xff] %v1014
  %1079 = vst [vmem:[%s4 + $0x198] sm:$0xff] %v1015
  %1080 = vst [vmem:[%s4 + $0x1a0] sm:$0xff] %v1016
  %1081 = vst [vmem:[%s4 + $0x1a8] sm:$0xff] %v1017
  %1082 = vst [vmem:[%s4 + $0x1b0] sm:$0xff] %v1018
  %1083 = vst [vmem:[%s4 + $0x1b8] sm:$0xff] %v1019
  %1084 = vst [vmem:[%s4 + $0x1c0] sm:$0xff] %v1020
  %1085 = vst [vmem:[%s4 + $0x1c8] sm:$0xff] %v1021
  %1086 = vst [vmem:[%s4 + $0x1d0] sm:$0xff] %v1022
  %1087 = vst [vmem:[%s4 + $0x1d8] sm:$0xff] %v1023
  %1088 = vst [vmem:[%s4 + $0x1e0] sm:$0xff] %v1024
  %1089 = vst [vmem:[%s4 + $0x1e8] sm:$0xff] %v1025
  %1090 = vst [vmem:[%s4 + $0x1f0] sm:$0xff] %v1026
  %1091 = vst [vmem:[%s4 + $0x1f8] sm:$0xff] %v1027
  // Predicated region
  $region18: #{cnn_block.1} parent=0 // pred_check
    _
  $region19: #{cnn_block.1} parent=0 // pred_check_branch
    %1093 = sbr.rel (0) target = $region21
  $region20: #{cnn_block.1} parent=0 // pred_region
    _
  $region21: #{cnn_block.1} parent=0 // pred_fallthru
    _
  // Predicated region
  $region22: #{cnn_block.1} parent=0 // pred_check
    _
  $region23: #{cnn_block.1} parent=0 // pred_check_branch
    %1095 = sbr.rel (0) target = $region25
  $region24: #{cnn_block.1} parent=0 // pred_region
    _
  $region25: #{cnn_block.1} parent=0 // pred_fallthru
    _

</llo_original>
